<compile_context>
chip_gen: v6e
topology: v6e:2x2x1
jax: 0.10.0
libtpu: 0.0.40
codegen_flags: <defaults>
</compile_context>

<pallas_src>
import jax
import jax.numpy as jnp
from jax.experimental import pallas as pl
from jax.experimental.pallas import tpu as pltpu


def _round_up(x, m):
    return ((x + m - 1) // m) * m


def _critic_kernel(state_ref, action_ref, w1s_ref, w1a_ref, b1_ref,
                   w2_ref, b2_ref, w3t_ref, b3_ref, o_ref):
    # Layer 1 (fused concat): ReLU(state @ W1_s + action @ W1_a + b1)
    # bf16 operands, f32 accumulation.
    h1 = jnp.dot(state_ref[...], w1s_ref[...], preferred_element_type=jnp.float32)
    h1 = h1 + jnp.dot(action_ref[...], w1a_ref[...], preferred_element_type=jnp.float32)
    h1 = jnp.maximum(h1 + b1_ref[...], 0.0).astype(jnp.bfloat16)

    # Layer 2: ReLU(h1 @ W2 + b2)
    h2 = jnp.dot(h1, w2_ref[...], preferred_element_type=jnp.float32)
    h2 = jnp.maximum(h2 + b2_ref[...], 0.0).astype(jnp.bfloat16)

    # Layer 3, lane-dense: q[r, b] = sum_h w3t[r, h] * h2[b, h]; only row 0 of w3t
    # is real (rows 1..15 are zero padding), so only row 0 of q is meaningful.
    q = jax.lax.dot_general(
        w3t_ref[...], h2,
        dimension_numbers=(((1,), (1,)), ((), ())),
        preferred_element_type=jnp.float32,
    )  # (16, bt); batch on the lane axis
    # Aligned (8, bt) unmasked store; row 0 carries q, the rest is zero padding + b3.
    o_ref[0] = q[0:8, :] + b3_ref[0, 0]


def prepare_critic_params(params, state_dim, action_dim):
    """One-time weight preprocessing (hoisted out of the per-call path):
    split W1 into state/action parts, zero-pad feature dims to multiples of 16,
    pad the final projection row to 16 sublanes, cast MXU operands to bf16."""
    w1, b1, w2, b2, w3, b3 = params
    H = w2.shape[0]
    sp, ap = _round_up(state_dim, 16), _round_up(action_dim, 16)
    w1 = jnp.asarray(w1, jnp.float32)
    w1_s = jnp.zeros((sp, H), jnp.float32).at[:state_dim].set(w1[:state_dim])
    w1_a = jnp.zeros((ap, H), jnp.float32).at[:action_dim].set(w1[state_dim:])
    w3t = jnp.zeros((16, H), jnp.float32).at[0].set(jnp.asarray(w3, jnp.float32).reshape(H))
    return (
        w1_s.astype(jnp.bfloat16),
        w1_a.astype(jnp.bfloat16),
        jnp.asarray(b1, jnp.float32).reshape(1, H),
        jnp.asarray(w2, jnp.bfloat16),
        jnp.asarray(b2, jnp.float32).reshape(1, H),
        w3t.astype(jnp.bfloat16),
        jnp.asarray(b3, jnp.float32).reshape(1, 1),  # keep (1,1): SMEM BlockSpec needs 2-D
    )


def critic_forward(state, action, prepared, *, max_block_batch=2048):
    """state: (B, S), action: (B, A) -> q: (B, 1) f32."""
    w1_s, w1_a, b1, w2, b2, w3t, b3 = prepared
    sp, H = w1_s.shape
    ap = w1_a.shape[0]
    B, S = state.shape
    A = action.shape[1]

    # Inputs: bf16 (halves input DMA), feature dims zero-padded to match the weights.
    state = state.astype(jnp.bfloat16)
    action = action.astype(jnp.bfloat16)
    if sp != S:
        state = jnp.pad(state, ((0, 0), (0, sp - S)))
    if ap != A:
        action = jnp.pad(action, ((0, 0), (0, ap - A)))

    # Adaptive batch tile: large enough to amortize the ~0.35us per-grid-step overhead,
    # capped at max_block_batch; for B >= 256 keep grid >= 2 so the "parallel" batch
    # axis can shard across both v7x TensorCores (costs nothing on 1-TC v5e/v6e).
    bp = _round_up(B, 128)
    if bp <= 128:
        bt = 128
    else:
        bt = min(_round_up(pl.cdiv(bp, 2), 128), max_block_batch)
    grid = pl.cdiv(bp, bt)
    b_pad = grid * bt
    if b_pad != B:
        state = jnp.pad(state, ((0, b_pad - B), (0, 0)))
        action = jnp.pad(action, ((0, b_pad - B), (0, 0)))

    flops = 2 * b_pad * H * (sp + ap + H + 1)
    bytes_accessed = (b_pad * (sp + ap) * 2          # bf16 input tiles
                      + (sp + ap + H + 16) * H * 2   # bf16 weights (resident)
                      + 2 * H * 4 + 4                # f32 biases
                      + grid * 8 * bt * 4)           # f32 output slab
    cost = pl.CostEstimate(flops=flops, transcendentals=0,
                           bytes_accessed=bytes_accessed)

    const = lambda shape: pl.BlockSpec(shape, lambda i: (0, 0))  # grid-invariant / resident
    out = pl.pallas_call(
        _critic_kernel,
        out_shape=jax.ShapeDtypeStruct((grid, 8, bt), jnp.float32),
        grid=(grid,),
        in_specs=[
            pl.BlockSpec((bt, sp), lambda i: (i, 0)),            # state tile
            pl.BlockSpec((bt, ap), lambda i: (i, 0)),            # action tile
            const((sp, H)),                                      # w1_s
            const((ap, H)),                                      # w1_a
            const((1, H)),                                       # b1
            const((H, H)),                                       # w2
            const((1, H)),                                       # b2
            const((16, H)),                                      # w3 row (sublane-padded)
            pl.BlockSpec(memory_space=pltpu.MemorySpace.SMEM),   # b3 scalar
        ],
        out_specs=pl.BlockSpec((1, 8, bt), lambda i: (i, 0, 0)),  # lane-dense q rows
        compiler_params=pltpu.CompilerParams(
            dimension_semantics=("parallel",),
            vmem_limit_bytes=32 * 1024 * 1024,
        ),
        cost_estimate=cost,
    )(state, action, w1_s, w1_a, b1, w2, b2, w3t, b3)

    # (grid, 8, bt): row 0 of each tile holds q lane-dense -> (B, 1) column.
    return out[:, 0, :].reshape(-1)[:B].reshape(B, 1)


def init_critic_params(key, state_dim, action_dim, hidden=128):
    """nn.Linear-style U(-1/sqrt(fan_in), 1/sqrt(fan_in)) init; weights stored in
    x @ W orientation: (w1, b1, w2, b2, w3, b3)."""
    def u(k, shape, fan_in):
        bound = 1.0 / (fan_in ** 0.5)
        return jax.random.uniform(k, shape, jnp.float32, -bound, bound)

    k = jax.random.split(key, 6)
    fan1 = state_dim + action_dim
    w1 = u(k[0], (fan1, hidden), fan1)
    b1 = u(k[1], (hidden,), fan1)
    w2 = u(k[2], (hidden, hidden), hidden)
    b2 = u(k[3], (hidden,), hidden)
    w3 = u(k[4], (hidden, 1), hidden)
    b3 = u(k[5], (1,), hidden)
    return (w1, b1, w2, b2, w3, b3)


def critic_reference(state, action, params):
    """f32 reference matching the PyTorch module semantics."""
    w1, b1, w2, b2, w3, b3 = params
    x = jnp.concatenate([state.astype(jnp.float32), action.astype(jnp.float32)], axis=1)
    h1 = jnp.maximum(x @ w1 + b1, 0.0)
    h2 = jnp.maximum(h1 @ w2 + b2, 0.0)
    return h2 @ w3 + b3


if __name__ == "__main__":
    key = jax.random.PRNGKey(0)
    state_dim, action_dim, hidden = 16, 8, 128

    kp, ks, ka, ks2, ka2 = jax.random.split(key, 5)
    params = init_critic_params(kp, state_dim, action_dim, hidden)
    prepared = prepare_critic_params(params, state_dim, action_dim)

    # Small batch (single 128-row tile).
    B = 4
    state = jax.random.normal(ks, (B, state_dim), jnp.float32)
    action = jax.random.normal(ka, (B, action_dim), jnp.float32)
    q = critic_forward(state, action, prepared)
    jax.block_until_ready(q)
    q_ref = critic_reference(state, action, params)
    assert q.shape == (B, 1)
    # bf16 MXU operands with f32 accumulation -> small drift vs the f32 reference.
    assert jnp.allclose(q, q_ref, atol=5e-2, rtol=5e-2), (q, q_ref)

    # Larger batch: exercises the multi-tile (grid=2) path, batch padding,
    # and the v7x dual-TC "parallel" sharding shape.
    B2 = 260
    state2 = jax.random.normal(ks2, (B2, state_dim), jnp.float32)
    action2 = jax.random.normal(ka2, (B2, action_dim), jnp.float32)
    q2 = critic_forward(state2, action2, prepared)
    jax.block_until_ready(q2)
    q2_ref = critic_reference(state2, action2, params)
    assert q2.shape == (B2, 1)
    assert jnp.allclose(q2, q2_ref, atol=5e-2, rtol=5e-2)

    print("KERNEL_OK")
</pallas_src>

<mosaic_0001>
module attributes {stable_mosaic.version = 11 : i64} {
  func.func @_critic_kernel(%arg0: i32, %arg1: memref<128x16xbf16, #tpu.memory_space<vmem>>, %arg2: memref<128x16xbf16, #tpu.memory_space<vmem>>, %arg3: memref<16x128xbf16, #tpu.memory_space<vmem>>, %arg4: memref<16x128xbf16, #tpu.memory_space<vmem>>, %arg5: memref<1x128xf32, #tpu.memory_space<vmem>>, %arg6: memref<128x128xbf16, #tpu.memory_space<vmem>>, %arg7: memref<1x128xf32, #tpu.memory_space<vmem>>, %arg8: memref<16x128xbf16, #tpu.memory_space<vmem>>, %arg9: memref<1x1xf32, #tpu.memory_space<smem>>, %arg10: memref<1x8x128xf32, #tpu.memory_space<vmem>>) attributes {dimension_semantics = [#tpu.dimension_semantics<parallel>], iteration_bounds = array<i64: 1>, scalar_prefetch = 0 : i64, scratch_operands = 0 : i64, tpu.core_type = #tpu.core_type<tc>, window_params = [{transform_indices = @transform_0, window_bounds = array<i64: 128, 16>}, {transform_indices = @transform_1, window_bounds = array<i64: 128, 16>}, {pipeline_mode = #tpu.pipeline_mode<synchronous>, transform_indices = @transform_2, window_bounds = array<i64: 16, 128>}, {pipeline_mode = #tpu.pipeline_mode<synchronous>, transform_indices = @transform_3, window_bounds = array<i64: 16, 128>}, {pipeline_mode = #tpu.pipeline_mode<synchronous>, transform_indices = @transform_4, window_bounds = array<i64: 1, 128>}, {pipeline_mode = #tpu.pipeline_mode<synchronous>, transform_indices = @transform_5, window_bounds = array<i64: 128, 128>}, {pipeline_mode = #tpu.pipeline_mode<synchronous>, transform_indices = @transform_6, window_bounds = array<i64: 1, 128>}, {pipeline_mode = #tpu.pipeline_mode<synchronous>, transform_indices = @transform_7, window_bounds = array<i64: 16, 128>}, {transform_indices = @transform_8, window_bounds = array<i64: 1, 1>}, {transform_indices = @transform_9, window_bounds = array<i64: 1, 8, 128>}]} {
    %c0 = arith.constant 0 : index
    %c0_0 = arith.constant 0 : index
    %0 = vector.load %arg1[%c0, %c0_0] : memref<128x16xbf16, #tpu.memory_space<vmem>>, vector<128x16xbf16>
    %c0_1 = arith.constant 0 : index
    %c0_2 = arith.constant 0 : index
    %1 = vector.load %arg3[%c0_1, %c0_2] : memref<16x128xbf16, #tpu.memory_space<vmem>>, vector<16x128xbf16>
    %cst = arith.constant dense<0.000000e+00> : vector<128x128xf32>
    %2 = tpu.matmul %0, %1, %cst {dimension_numbers = #tpu.dot_dimension_numbers<[1], [0], [0], [1], [0, 0, 1, 1], [], []>} : vector<128x16xbf16>, vector<16x128xbf16>, vector<128x128xf32> -> vector<128x128xf32>
    %c0_3 = arith.constant 0 : index
    %c0_4 = arith.constant 0 : index
    %3 = vector.load %arg2[%c0_3, %c0_4] : memref<128x16xbf16, #tpu.memory_space<vmem>>, vector<128x16xbf16>
    %c0_5 = arith.constant 0 : index
    %c0_6 = arith.constant 0 : index
    %4 = vector.load %arg4[%c0_5, %c0_6] : memref<16x128xbf16, #tpu.memory_space<vmem>>, vector<16x128xbf16>
    %cst_7 = arith.constant dense<0.000000e+00> : vector<128x128xf32>
    %5 = tpu.matmul %3, %4, %cst_7 {dimension_numbers = #tpu.dot_dimension_numbers<[1], [0], [0], [1], [0, 0, 1, 1], [], []>} : vector<128x16xbf16>, vector<16x128xbf16>, vector<128x128xf32> -> vector<128x128xf32>
    %6 = arith.addf %2, %5 : vector<128x128xf32>
    %c0_8 = arith.constant 0 : index
    %c0_9 = arith.constant 0 : index
    %7 = vector.load %arg5[%c0_8, %c0_9] : memref<1x128xf32, #tpu.memory_space<vmem>>, vector<1x128xf32>
    %8 = vector.broadcast %7 : vector<1x128xf32> to vector<128x128xf32>
    %9 = arith.addf %6, %8 : vector<128x128xf32>
    %cst_10 = arith.constant 0.000000e+00 : f32
    %10 = vector.broadcast %cst_10 : f32 to vector<128x128xf32>
    %11 = arith.maximumf %9, %10 : vector<128x128xf32>
    %12 = arith.truncf %11 : vector<128x128xf32> to vector<128x128xbf16>
    %c0_11 = arith.constant 0 : index
    %c0_12 = arith.constant 0 : index
    %13 = vector.load %arg6[%c0_11, %c0_12] : memref<128x128xbf16, #tpu.memory_space<vmem>>, vector<128x128xbf16>
    %cst_13 = arith.constant dense<0.000000e+00> : vector<128x128xf32>
    %14 = tpu.matmul %12, %13, %cst_13 {dimension_numbers = #tpu.dot_dimension_numbers<[1], [0], [0], [1], [0, 0, 1, 1], [], []>} : vector<128x128xbf16>, vector<128x128xbf16>, vector<128x128xf32> -> vector<128x128xf32>
    %c0_14 = arith.constant 0 : index
    %c0_15 = arith.constant 0 : index
    %15 = vector.load %arg7[%c0_14, %c0_15] : memref<1x128xf32, #tpu.memory_space<vmem>>, vector<1x128xf32>
    %16 = vector.broadcast %15 : vector<1x128xf32> to vector<128x128xf32>
    %17 = arith.addf %14, %16 : vector<128x128xf32>
    %cst_16 = arith.constant 0.000000e+00 : f32
    %18 = vector.broadcast %cst_16 : f32 to vector<128x128xf32>
    %19 = arith.maximumf %17, %18 : vector<128x128xf32>
    %20 = arith.truncf %19 : vector<128x128xf32> to vector<128x128xbf16>
    %c0_17 = arith.constant 0 : index
    %c0_18 = arith.constant 0 : index
    %21 = vector.load %arg8[%c0_17, %c0_18] : memref<16x128xbf16, #tpu.memory_space<vmem>>, vector<16x128xbf16>
    %cst_19 = arith.constant dense<0.000000e+00> : vector<16x128xf32>
    %22 = tpu.matmul %21, %20, %cst_19 {dimension_numbers = #tpu.dot_dimension_numbers<[1], [1], [0], [0], [0, 0, 1, 0], [], []>} : vector<16x128xbf16>, vector<128x128xbf16>, vector<16x128xf32> -> vector<16x128xf32>
    %23 = vector.extract_strided_slice %22 {offsets = [0, 0], sizes = [8, 128], strides = [1, 1]} : vector<16x128xf32> to vector<8x128xf32>
    %c0_20 = arith.constant 0 : index
    %c0_21 = arith.constant 0 : index
    %24 = memref.load %arg9[%c0_20, %c0_21] : memref<1x1xf32, #tpu.memory_space<smem>>
    %25 = vector.broadcast %24 : f32 to vector<8x128xf32>
    %26 = arith.addf %23, %25 : vector<8x128xf32>
    %c0_22 = arith.constant 0 : index
    %c0_23 = arith.constant 0 : index
    %c0_24 = arith.constant 0 : index
    %27 = vector.load %arg10[%c0_22, %c0_23, %c0_24] : memref<1x8x128xf32, #tpu.memory_space<vmem>>, vector<1x8x128xf32>
    %28 = vector.shape_cast %27 : vector<1x8x128xf32> to vector<8x128xf32>
    %29 = vector.shape_cast %26 : vector<8x128xf32> to vector<1x8x128xf32>
    tpu.vector_store %arg10[%c0_22, %c0_23, %c0_24], %29 {strides = array<i32>} : memref<1x8x128xf32, #tpu.memory_space<vmem>>, vector<1x8x128xf32>,
    return
  }
  func.func @transform_0(%arg0: i32) -> (i32, i32) {
    %c0_i32 = arith.constant 0 : i32
    %c0_i32_0 = arith.constant 0 : i32
    return %arg0, %c0_i32 : i32, i32
  }
  func.func @transform_1(%arg0: i32) -> (i32, i32) {
    %c0_i32 = arith.constant 0 : i32
    %c0_i32_0 = arith.constant 0 : i32
    return %arg0, %c0_i32 : i32, i32
  }
  func.func @transform_2(%arg0: i32) -> (i32, i32) {
    %c0_i32 = arith.constant 0 : i32
    %c0_i32_0 = arith.constant 0 : i32
    %c0_i32_1 = arith.constant 0 : i32
    return %c0_i32, %c0_i32_0 : i32, i32
  }
  func.func @transform_3(%arg0: i32) -> (i32, i32) {
    %c0_i32 = arith.constant 0 : i32
    %c0_i32_0 = arith.constant 0 : i32
    %c0_i32_1 = arith.constant 0 : i32
    return %c0_i32, %c0_i32_0 : i32, i32
  }
  func.func @transform_4(%arg0: i32) -> (i32, i32) {
    %c0_i32 = arith.constant 0 : i32
    %c0_i32_0 = arith.constant 0 : i32
    %c0_i32_1 = arith.constant 0 : i32
    return %c0_i32, %c0_i32_0 : i32, i32
  }
  func.func @transform_5(%arg0: i32) -> (i32, i32) {
    %c0_i32 = arith.constant 0 : i32
    %c0_i32_0 = arith.constant 0 : i32
    %c0_i32_1 = arith.constant 0 : i32
    return %c0_i32, %c0_i32_0 : i32, i32
  }
  func.func @transform_6(%arg0: i32) -> (i32, i32) {
    %c0_i32 = arith.constant 0 : i32
    %c0_i32_0 = arith.constant 0 : i32
    %c0_i32_1 = arith.constant 0 : i32
    return %c0_i32, %c0_i32_0 : i32, i32
  }
  func.func @transform_7(%arg0: i32) -> (i32, i32) {
    %c0_i32 = arith.constant 0 : i32
    %c0_i32_0 = arith.constant 0 : i32
    %c0_i32_1 = arith.constant 0 : i32
    return %c0_i32, %c0_i32_0 : i32, i32
  }
  func.func @transform_8(%arg0: i32) -> (i32, i32) {
    %c0_i32 = arith.constant 0 : i32
    %c0_i32_0 = arith.constant 0 : i32
    %c0_i32_1 = arith.constant 0 : i32
    return %c0_i32, %c0_i32_0 : i32, i32
  }
  func.func @transform_9(%arg0: i32) -> (i32, i32, i32) {
    %c0_i32 = arith.constant 0 : i32
    %c0_i32_0 = arith.constant 0 : i32
    %c0_i32_1 = arith.constant 0 : i32
    return %arg0, %c0_i32, %c0_i32_0 : i32, i32, i32
  }
}

</mosaic_0001>

<llo_original>
// kernel: tpu_custom_call.1
$region0: #{tpu_custom_call.1}
  #allocation0 [shape = 'u32[]', space=smem, size = 0x4, offset = 0x4, fixed_abs, tag = 'smem constant byte address 0x4 - core index']
  #allocation1 [shape = 'u32[144,128]{1,0:T(1,128)}', space=vmem, size = 0x12000, scoped, tag = 'internal scratch']
  #allocation2 [shape = 'f32[1,1]{1,0:T(1,128)S(6)}', space=smem, size = 0x200, scoped, tag = 'scoped memory for tpu_custom_call.1']
  %s0 = inlined_call_operand.vmem [shape: bf16[128,16], index: 0, kind: input, shape index: {}]
  %s1 = inlined_call_operand.vmem [shape: bf16[128,16], index: 1, kind: input, shape index: {}]
  %s2 = inlined_call_operand.vmem [shape: bf16[16,128], index: 2, kind: input, shape index: {}]
  %s3 = inlined_call_operand.vmem [shape: bf16[16,128], index: 3, kind: input, shape index: {}]
  %s4 = inlined_call_operand.vmem [shape: f32[1,128], index: 4, kind: input, shape index: {}]
  %s5 = inlined_call_operand.vmem [shape: bf16[128,128], index: 5, kind: input, shape index: {}]
  %s6 = inlined_call_operand.vmem [shape: f32[1,128], index: 6, kind: input, shape index: {}]
  %s7 = inlined_call_operand.vmem [shape: bf16[16,128], index: 7, kind: input, shape index: {}]
  %s8 = inlined_call_operand.<no memory space> [shape: f32[1,1], index: 8, kind: input, shape index: {}]
  %s9 = inlined_call_operand.hbm [shape: f32[1,8,128], index: 9, kind: output, shape index: {}]
  %s10 = sld [smem:[#allocation0]]
  $region46: #{tpu_custom_call.1} parent=0
    _
  %s12 = ssub.s32 1, %s10
  %s13 = scalar_select 0, %s12, %s10
  %14 = sst [smem:[#allocation2]] %s8
  $region1: #{tpu_custom_call.1} parent=0
    #allocation3 [shape = 'u8[4096]{0}', space=vmem, size = 0x1000, scoped, tag = 'output window, operand 0, single buffered']
    #allocation4 [shape = 's32[1]{0}', space=sflag, size = 0x4, scoped, tag = 'scoped memory for tpu_custom_call.1']
    %15 = vsyncpa [#allocation4], 0
    // Predicated region
    $region2: #{tpu_custom_call.1} parent=1 // pred_check
      _
    $region3: #{tpu_custom_call.1} parent=1 // pred_check_branch
      %17 = sbr.rel (0) target = $region5
    $region4: #{tpu_custom_call.1} parent=1 // pred_region
      _
    $region5: #{tpu_custom_call.1} parent=1 // pred_fallthru
      _
    // Predicated region
    $region6: #{tpu_custom_call.1} parent=1 // pred_check
      _
    $region7: #{tpu_custom_call.1} parent=1 // pred_check_branch
      %19 = sbr.rel (0) target = $region9
    $region8: #{tpu_custom_call.1} parent=1 // pred_region
      _
    $region9: #{tpu_custom_call.1} parent=1 // pred_fallthru
      _
    // Predicated region
    $region10: #{tpu_custom_call.1} parent=1 // pred_check
      _
    $region11: #{tpu_custom_call.1} parent=1 // pred_check_branch
      %21 = sbr.rel (0) target = $region13
    $region12: #{tpu_custom_call.1} parent=1 // pred_region
      _
    $region13: #{tpu_custom_call.1} parent=1 // pred_fallthru
      _
    // Predicated region
    $region14: #{tpu_custom_call.1} parent=1 // pred_check
      _
    $region15: #{tpu_custom_call.1} parent=1 // pred_check_branch
      %23 = sbr.rel (0) target = $region17
    $region16: #{tpu_custom_call.1} parent=1 // pred_region
      _
    $region17: #{tpu_custom_call.1} parent=1 // pred_fallthru
      _
    // Predicated region
    $region18: #{tpu_custom_call.1} parent=1 // pred_check
      _
    $region19: #{tpu_custom_call.1} parent=1 // pred_check_branch
      %25 = sbr.rel (0) target = $region21
    $region20: #{tpu_custom_call.1} parent=1 // pred_region
      _
    $region21: #{tpu_custom_call.1} parent=1 // pred_fallthru
      _
    // Predicated region
    $region22: #{tpu_custom_call.1} parent=1 // pred_check
      _
    $region23: #{tpu_custom_call.1} parent=1 // pred_check_branch
      %27 = sbr.rel (0) target = $region25
    $region24: #{tpu_custom_call.1} parent=1 // pred_region
      _
    $region25: #{tpu_custom_call.1} parent=1 // pred_fallthru
      _
    // Predicated region
    $region26: #{tpu_custom_call.1} parent=1 // pred_check
      _
    $region27: #{tpu_custom_call.1} parent=1 // pred_check_branch
      %29 = sbr.rel (0) target = $region29
    $region28: #{tpu_custom_call.1} parent=1 // pred_region
      _
    $region29: #{tpu_custom_call.1} parent=1 // pred_fallthru
      _
    // Predicated region
    $region30: #{tpu_custom_call.1} parent=1 // pred_check
      _
    $region31: #{tpu_custom_call.1} parent=1 // pred_check_branch
      %31 = sbr.rel (0) target = $region33
    $region32: #{tpu_custom_call.1} parent=1 // pred_region
      _
    $region33: #{tpu_custom_call.1} parent=1 // pred_fallthru
      _
    // Predicated region
    $region34: #{tpu_custom_call.1} parent=1 // pred_check
      _
    $region35: #{tpu_custom_call.1} parent=1 // pred_check_branch
      %33 = sbr.rel (0) target = $region37
    $region36: #{tpu_custom_call.1} parent=1 // pred_region
      _
    $region37: #{tpu_custom_call.1} parent=1 // pred_fallthru
      _
    %v35 = vld [vmem:[%s0] sm:$0xf]
    %v36 = vld [vmem:[%s0 + $0x4] sm:$0xf]
    %v37 = vld [vmem:[%s0 + $0x8] sm:$0xf]
    %v38 = vld [vmem:[%s0 + $0xc] sm:$0xf]
    %v39 = vld [vmem:[%s0 + $0x10] sm:$0xf]
    %v40 = vld [vmem:[%s0 + $0x14] sm:$0xf]
    %v41 = vld [vmem:[%s0 + $0x18] sm:$0xf]
    %v42 = vld [vmem:[%s0 + $0x1c] sm:$0xf]
    %v43 = vld [vmem:[%s0 + $0x20] sm:$0xf]
    %v44 = vld [vmem:[%s0 + $0x24] sm:$0xf]
    %v45 = vld [vmem:[%s0 + $0x28] sm:$0xf]
    %v46 = vld [vmem:[%s0 + $0x2c] sm:$0xf]
    %v47 = vld [vmem:[%s0 + $0x30] sm:$0xf]
    %v48 = vld [vmem:[%s0 + $0x34] sm:$0xf]
    %v49 = vld [vmem:[%s0 + $0x38] sm:$0xf]
    %v50 = vld [vmem:[%s0 + $0x3c] sm:$0xf]
    %v51 = vld [vmem:[%s2] sm:$0xf]
    %v52 = vld [vmem:[%s2 + $0x4] sm:$0xf]
    %v53 = vld [vmem:[%s1] sm:$0xf]
    %v54 = vld [vmem:[%s1 + $0x4] sm:$0xf]
    %v55 = vld [vmem:[%s1 + $0x8] sm:$0xf]
    %v56 = vld [vmem:[%s1 + $0xc] sm:$0xf]
    %v57 = vld [vmem:[%s1 + $0x10] sm:$0xf]
    %v58 = vld [vmem:[%s1 + $0x14] sm:$0xf]
    %v59 = vld [vmem:[%s1 + $0x18] sm:$0xf]
    %v60 = vld [vmem:[%s1 + $0x1c] sm:$0xf]
    %v61 = vld [vmem:[%s1 + $0x20] sm:$0xf]
    %v62 = vld [vmem:[%s1 + $0x24] sm:$0xf]
    %v63 = vld [vmem:[%s1 + $0x28] sm:$0xf]
    %v64 = vld [vmem:[%s1 + $0x2c] sm:$0xf]
    %v65 = vld [vmem:[%s1 + $0x30] sm:$0xf]
    %v66 = vld [vmem:[%s1 + $0x34] sm:$0xf]
    %v67 = vld [vmem:[%s1 + $0x38] sm:$0xf]
    %v68 = vld [vmem:[%s1 + $0x3c] sm:$0xf]
    %v69 = vld [vmem:[%s3] sm:$0xf]
    %v70 = vld [vmem:[%s3 + $0x4] sm:$0xf]
    %v87 = vunpack.c.l.b16 %v53
    %v88 = vunpack.c.l.b16 %v54
    %v89 = vunpack.c.l.b16 %v55
    %v90 = vunpack.c.l.b16 %v56
    %v91 = vunpack.c.l.b16 %v57
    %v92 = vunpack.c.l.b16 %v58
    %v93 = vunpack.c.l.b16 %v59
    %v94 = vunpack.c.l.b16 %v60
    %v95 = vunpack.c.l.b16 %v61
    %v96 = vunpack.c.l.b16 %v62
    %v97 = vunpack.c.l.b16 %v63
    %v98 = vunpack.c.l.b16 %v64
    %v99 = vunpack.c.l.b16 %v65
    %v100 = vunpack.c.l.b16 %v66
    %v101 = vunpack.c.l.b16 %v67
    %v102 = vunpack.c.l.b16 %v68
    %v103 = vpack.c.b16 %v88, %v87
    %v104 = vpack.c.b16 %v90, %v89
    %v105 = vpack.c.b16 %v92, %v91
    %v106 = vpack.c.b16 %v94, %v93
    %v107 = vpack.c.b16 %v96, %v95
    %v108 = vpack.c.b16 %v98, %v97
    %v109 = vpack.c.b16 %v100, %v99
    %v110 = vpack.c.b16 %v102, %v101
    %v113 = vunpack.c.l.b16 %v69
    %v114 = vunpack.c.l.b16 %v70
    %v115 = vpack.c.b16 %v114, %v113
    %vm117 = vcmask 130048
    %v119 = vsel %vm117, %v103, 0
    %v122 = vsel %vm117, %v104, 0
    %v125 = vsel %vm117, %v105, 0
    %v128 = vsel %vm117, %v106, 0
    %v131 = vsel %vm117, %v107, 0
    %v134 = vsel %vm117, %v108, 0
    %v137 = vsel %vm117, %v109, 0
    %v140 = vsel %vm117, %v110, 0
    %142 = vmatprep.subr.bf16.mxu0 0
    %143 = vmatpush1.bf16.msra.mxu0 0
    %144 = vmatprep.subr.bf16.mxu0 0
    %145 = vmatpush1.bf16.msra.mxu0 0
    %146 = vmatprep.subr.bf16.mxu0 0
    %147 = vmatpush1.bf16.msra.mxu0 0
    %148 = vmatprep.subr.bf16.mxu0 0
    %149 = vmatpush1.bf16.msra.mxu0 0
    %150 = vmatprep.subr.bf16.mxu0 0
    %151 = vmatpush1.bf16.msra.mxu0 0
    %152 = vmatprep.subr.bf16.mxu0 0
    %153 = vmatpush1.bf16.msra.mxu0 0
    %154 = vmatprep.subr.bf16.mxu0 0
    %155 = vmatpush1.bf16.msra.mxu0 0
    %156 = vmatprep.subr.bf16.mxu0 0
    %157 = vmatpush1.bf16.msra.mxu0 %v115
    %158 = vmatprep.subr.bf16.mxu0 0
    %159 = vmatpush2.bf16.msra.mxu0 0
    %160 = vmatprep.subr.bf16.mxu0 0
    %161 = vmatpush2.bf16.msra.mxu0 0
    %162 = vmatprep.subr.bf16.mxu0 0
    %163 = vmatpush2.bf16.msra.mxu0 0
    %164 = vmatprep.subr.bf16.mxu0 0
    %165 = vmatpush2.bf16.msra.mxu0 0
    %166 = vmatprep.subr.bf16.mxu0 0
    %167 = vmatpush2.bf16.msra.mxu0 0
    %168 = vmatprep.subr.bf16.mxu0 0
    %169 = vmatpush2.bf16.msra.mxu0 0
    %170 = vmatprep.subr.bf16.mxu0 0
    %171 = vmatpush2.bf16.msra.mxu0 0
    %172 = vmatprep.subr.bf16.mxu0 0
    %173 = vmatpush2.bf16.msra.mxu0 0
    %174 = vmatprep.mubr.bf16.mxu0 0
    %175 = vmatmul.mubr.bf16.gmra.mxu0 %v119
    %v176 = vpop.f32.mrf.mxu0
    %v177 = vadd.f32 0.0, %v176
    %v178 = vpop.f32.mrf.mxu0
    %v179 = vpop.f32.mrf.mxu0
    %v180 = vadd.f32 0.0, %v179
    %v181 = vpop.f32.mrf.mxu0
    %182 = vmatprep.mubr.bf16.mxu0 0
    %183 = vmatmul.mubr.bf16.gmra.mxu0 %v122
    %v184 = vpop.f32.mrf.mxu0
    %v185 = vadd.f32 0.0, %v184
    %v186 = vpop.f32.mrf.mxu0
    %v187 = vpop.f32.mrf.mxu0
    %v188 = vadd.f32 0.0, %v187
    %v189 = vpop.f32.mrf.mxu0
    %190 = vmatprep.mubr.bf16.mxu0 0
    %191 = vmatmul.mubr.bf16.gmra.mxu0 %v125
    %v192 = vpop.f32.mrf.mxu0
    %v193 = vadd.f32 0.0, %v192
    %v194 = vpop.f32.mrf.mxu0
    %v195 = vpop.f32.mrf.mxu0
    %v196 = vadd.f32 0.0, %v195
    %v197 = vpop.f32.mrf.mxu0
    %198 = vmatprep.mubr.bf16.mxu0 0
    %199 = vmatmul.mubr.bf16.gmra.mxu0 %v128
    %v200 = vpop.f32.mrf.mxu0
    %v201 = vadd.f32 0.0, %v200
    %v202 = vpop.f32.mrf.mxu0
    %v203 = vpop.f32.mrf.mxu0
    %v204 = vadd.f32 0.0, %v203
    %v205 = vpop.f32.mrf.mxu0
    %206 = vmatprep.mubr.bf16.mxu0 0
    %207 = vmatmul.mubr.bf16.gmra.mxu0 %v131
    %v208 = vpop.f32.mrf.mxu0
    %v209 = vadd.f32 0.0, %v208
    %v210 = vpop.f32.mrf.mxu0
    %v211 = vpop.f32.mrf.mxu0
    %v212 = vadd.f32 0.0, %v211
    %v213 = vpop.f32.mrf.mxu0
    %214 = vmatprep.mubr.bf16.mxu0 0
    %215 = vmatmul.mubr.bf16.gmra.mxu0 %v134
    %v216 = vpop.f32.mrf.mxu0
    %v217 = vadd.f32 0.0, %v216
    %v218 = vpop.f32.mrf.mxu0
    %v219 = vpop.f32.mrf.mxu0
    %v220 = vadd.f32 0.0, %v219
    %v221 = vpop.f32.mrf.mxu0
    %222 = vmatprep.mubr.bf16.mxu0 0
    %223 = vmatmul.mubr.bf16.gmra.mxu0 %v137
    %v224 = vpop.f32.mrf.mxu0
    %v225 = vadd.f32 0.0, %v224
    %v226 = vpop.f32.mrf.mxu0
    %v227 = vpop.f32.mrf.mxu0
    %v228 = vadd.f32 0.0, %v227
    %v229 = vpop.f32.mrf.mxu0
    %230 = vmatprep.mubr.bf16.mxu0 0
    %231 = vmatmul.mubr.bf16.gmra.mxu0 %v140
    %v232 = vpop.f32.mrf.mxu0
    %v233 = vadd.f32 0.0, %v232
    %v234 = vpop.f32.mrf.mxu0
    %v235 = vpop.f32.mrf.mxu0
    %v236 = vadd.f32 0.0, %v235
    %v237 = vpop.f32.mrf.mxu0
    %238 = vdwg.mxu0
    %v255 = vunpack.c.l.b16 %v35
    %v256 = vunpack.c.l.b16 %v36
    %v257 = vunpack.c.l.b16 %v37
    %v258 = vunpack.c.l.b16 %v38
    %v259 = vunpack.c.l.b16 %v39
    %v260 = vunpack.c.l.b16 %v40
    %v261 = vunpack.c.l.b16 %v41
    %v262 = vunpack.c.l.b16 %v42
    %v263 = vunpack.c.l.b16 %v43
    %v264 = vunpack.c.l.b16 %v44
    %v265 = vunpack.c.l.b16 %v45
    %v266 = vunpack.c.l.b16 %v46
    %v267 = vunpack.c.l.b16 %v47
    %v268 = vunpack.c.l.b16 %v48
    %v269 = vunpack.c.l.b16 %v49
    %v270 = vunpack.c.l.b16 %v50
    %v271 = vpack.c.b16 %v256, %v255
    %v272 = vpack.c.b16 %v258, %v257
    %v273 = vpack.c.b16 %v260, %v259
    %v274 = vpack.c.b16 %v262, %v261
    %v275 = vpack.c.b16 %v264, %v263
    %v276 = vpack.c.b16 %v266, %v265
    %v277 = vpack.c.b16 %v268, %v267
    %v278 = vpack.c.b16 %v270, %v269
    %v281 = vunpack.c.l.b16 %v51
    %v282 = vunpack.c.l.b16 %v52
    %v283 = vpack.c.b16 %v282, %v281
    %v286 = vsel %vm117, %v271, 0
    %v289 = vsel %vm117, %v272, 0
    %v292 = vsel %vm117, %v273, 0
    %v295 = vsel %vm117, %v274, 0
    %v298 = vsel %vm117, %v275, 0
    %v301 = vsel %vm117, %v276, 0
    %v304 = vsel %vm117, %v277, 0
    %v307 = vsel %vm117, %v278, 0
    %309 = vmatprep.subr.bf16.mxu0 0
    %310 = vmatpush1.bf16.msra.mxu0 0
    %311 = vmatprep.subr.bf16.mxu0 0
    %312 = vmatpush1.bf16.msra.mxu0 0
    %313 = vmatprep.subr.bf16.mxu0 0
    %314 = vmatpush1.bf16.msra.mxu0 0
    %315 = vmatprep.subr.bf16.mxu0 0
    %316 = vmatpush1.bf16.msra.mxu0 0
    %317 = vmatprep.subr.bf16.mxu0 0
    %318 = vmatpush1.bf16.msra.mxu0 0
    %319 = vmatprep.subr.bf16.mxu0 0
    %320 = vmatpush1.bf16.msra.mxu0 0
    %321 = vmatprep.subr.bf16.mxu0 0
    %322 = vmatpush1.bf16.msra.mxu0 0
    %323 = vmatprep.subr.bf16.mxu0 0
    %324 = vmatpush1.bf16.msra.mxu0 %v283
    %325 = vmatprep.subr.bf16.mxu0 0
    %326 = vmatpush2.bf16.msra.mxu0 0
    %327 = vmatprep.subr.bf16.mxu0 0
    %328 = vmatpush2.bf16.msra.mxu0 0
    %329 = vmatprep.subr.bf16.mxu0 0
    %330 = vmatpush2.bf16.msra.mxu0 0
    %331 = vmatprep.subr.bf16.mxu0 0
    %332 = vmatpush2.bf16.msra.mxu0 0
    %333 = vmatprep.subr.bf16.mxu0 0
    %334 = vmatpush2.bf16.msra.mxu0 0
    %335 = vmatprep.subr.bf16.mxu0 0
    %336 = vmatpush2.bf16.msra.mxu0 0
    %337 = vmatprep.subr.bf16.mxu0 0
    %338 = vmatpush2.bf16.msra.mxu0 0
    %339 = vmatprep.subr.bf16.mxu0 0
    %340 = vmatpush2.bf16.msra.mxu0 0
    %341 = vmatprep.mubr.bf16.mxu0 0
    %342 = vmatmul.mubr.bf16.gmra.mxu0 %v286
    %v343 = vpop.f32.mrf.mxu0
    %v344 = vadd.f32 %v177, %v343
    %v345 = vpop.f32.mrf.mxu0
    %v346 = vpop.f32.mrf.mxu0
    %v347 = vadd.f32 %v180, %v346
    %v348 = vpop.f32.mrf.mxu0
    %349 = vmatprep.mubr.bf16.mxu0 0
    %350 = vmatmul.mubr.bf16.gmra.mxu0 %v289
    %v351 = vpop.f32.mrf.mxu0
    %v352 = vadd.f32 %v185, %v351
    %v353 = vpop.f32.mrf.mxu0
    %v354 = vpop.f32.mrf.mxu0
    %v355 = vadd.f32 %v188, %v354
    %v356 = vpop.f32.mrf.mxu0
    %357 = vmatprep.mubr.bf16.mxu0 0
    %358 = vmatmul.mubr.bf16.gmra.mxu0 %v292
    %v359 = vpop.f32.mrf.mxu0
    %v360 = vadd.f32 %v193, %v359
    %v361 = vpop.f32.mrf.mxu0
    %v362 = vpop.f32.mrf.mxu0
    %v363 = vadd.f32 %v196, %v362
    %v364 = vpop.f32.mrf.mxu0
    %365 = vmatprep.mubr.bf16.mxu0 0
    %366 = vmatmul.mubr.bf16.gmra.mxu0 %v295
    %v367 = vpop.f32.mrf.mxu0
    %v368 = vadd.f32 %v201, %v367
    %v369 = vpop.f32.mrf.mxu0
    %v370 = vpop.f32.mrf.mxu0
    %v371 = vadd.f32 %v204, %v370
    %v372 = vpop.f32.mrf.mxu0
    %373 = vmatprep.mubr.bf16.mxu0 0
    %374 = vmatmul.mubr.bf16.gmra.mxu0 %v298
    %v375 = vpop.f32.mrf.mxu0
    %v376 = vadd.f32 %v209, %v375
    %v377 = vpop.f32.mrf.mxu0
    %v378 = vpop.f32.mrf.mxu0
    %v379 = vadd.f32 %v212, %v378
    %v380 = vpop.f32.mrf.mxu0
    %381 = vmatprep.mubr.bf16.mxu0 0
    %382 = vmatmul.mubr.bf16.gmra.mxu0 %v301
    %v383 = vpop.f32.mrf.mxu0
    %v384 = vadd.f32 %v217, %v383
    %v385 = vpop.f32.mrf.mxu0
    %v386 = vpop.f32.mrf.mxu0
    %v387 = vadd.f32 %v220, %v386
    %v388 = vpop.f32.mrf.mxu0
    %389 = vmatprep.mubr.bf16.mxu0 0
    %390 = vmatmul.mubr.bf16.gmra.mxu0 %v304
    %v391 = vpop.f32.mrf.mxu0
    %v392 = vadd.f32 %v225, %v391
    %v393 = vpop.f32.mrf.mxu0
    %v394 = vpop.f32.mrf.mxu0
    %v395 = vadd.f32 %v228, %v394
    %v396 = vpop.f32.mrf.mxu0
    %397 = vmatprep.mubr.bf16.mxu0 0
    %398 = vmatmul.mubr.bf16.gmra.mxu0 %v307
    %v399 = vpop.f32.mrf.mxu0
    %v400 = vadd.f32 %v233, %v399
    %v401 = vpop.f32.mrf.mxu0
    %v402 = vpop.f32.mrf.mxu0
    %v403 = vadd.f32 %v236, %v402
    %v404 = vpop.f32.mrf.mxu0
    %405 = vdwg.mxu0
    %v406 = vld [vmem:[%s4] sm:$0x1]
    %v408 = vlaneseq
    %v409 = vshrl.u32 %v408, 7
    %v410 = vsub.s32 0, %v409
    %v411 = vrot.slane %v406, %v410
    %v413 = vadd.f32 %v344, %v411
    %v414 = vadd.f32 %v347, %v411
    %v415 = vadd.f32 %v352, %v411
    %v416 = vadd.f32 %v355, %v411
    %v417 = vadd.f32 %v360, %v411
    %v418 = vadd.f32 %v363, %v411
    %v419 = vadd.f32 %v368, %v411
    %v420 = vadd.f32 %v371, %v411
    %v421 = vadd.f32 %v376, %v411
    %v422 = vadd.f32 %v379, %v411
    %v423 = vadd.f32 %v384, %v411
    %v424 = vadd.f32 %v387, %v411
    %v425 = vadd.f32 %v392, %v411
    %v426 = vadd.f32 %v395, %v411
    %v427 = vadd.f32 %v400, %v411
    %v428 = vadd.f32 %v403, %v411
    %v429 = vmax.f32 %v413, 0.0
    %v430 = vmax.f32 %v414, 0.0
    %v431 = vmax.f32 %v415, 0.0
    %v432 = vmax.f32 %v416, 0.0
    %v433 = vmax.f32 %v417, 0.0
    %v434 = vmax.f32 %v418, 0.0
    %v435 = vmax.f32 %v419, 0.0
    %v436 = vmax.f32 %v420, 0.0
    %v437 = vmax.f32 %v421, 0.0
    %v438 = vmax.f32 %v422, 0.0
    %v439 = vmax.f32 %v423, 0.0
    %v440 = vmax.f32 %v424, 0.0
    %v441 = vmax.f32 %v425, 0.0
    %v442 = vmax.f32 %v426, 0.0
    %v443 = vmax.f32 %v427, 0.0
    %v444 = vmax.f32 %v428, 0.0
    %v445 = vpack.c.bf16 %v430, %v429
    %v446 = vpack.c.bf16 %v432, %v431
    %v447 = vpack.c.bf16 %v434, %v433
    %v448 = vpack.c.bf16 %v436, %v435
    %v449 = vpack.c.bf16 %v438, %v437
    %v450 = vpack.c.bf16 %v440, %v439
    %v451 = vpack.c.bf16 %v442, %v441
    %v452 = vpack.c.bf16 %v444, %v443
    %v453 = vld [vmem:[%s5] sm:$0xf]
    %v454 = vld [vmem:[%s5 + $0x4] sm:$0xf]
    %v455 = vld [vmem:[%s5 + $0x8] sm:$0xf]
    %v456 = vld [vmem:[%s5 + $0xc] sm:$0xf]
    %v457 = vld [vmem:[%s5 + $0x10] sm:$0xf]
    %v458 = vld [vmem:[%s5 + $0x14] sm:$0xf]
    %v459 = vld [vmem:[%s5 + $0x18] sm:$0xf]
    %v460 = vld [vmem:[%s5 + $0x1c] sm:$0xf]
    %v461 = vld [vmem:[%s5 + $0x20] sm:$0xf]
    %v462 = vld [vmem:[%s5 + $0x24] sm:$0xf]
    %v463 = vld [vmem:[%s5 + $0x28] sm:$0xf]
    %v464 = vld [vmem:[%s5 + $0x2c] sm:$0xf]
    %v465 = vld [vmem:[%s5 + $0x30] sm:$0xf]
    %v466 = vld [vmem:[%s5 + $0x34] sm:$0xf]
    %v467 = vld [vmem:[%s5 + $0x38] sm:$0xf]
    %v468 = vld [vmem:[%s5 + $0x3c] sm:$0xf]
    %v469 = vld [vmem:[%s6] sm:$0x1]
    %v471 = vlaneseq
    %v472 = vshrl.u32 %v471, 7
    %v473 = vsub.s32 0, %v472
    %v474 = vrot.slane %v469, %v473
    %v492 = vunpack.c.l.b16 %v453
    %v493 = vunpack.c.l.b16 %v454
    %v494 = vunpack.c.l.b16 %v455
    %v495 = vunpack.c.l.b16 %v456
    %v496 = vunpack.c.l.b16 %v457
    %v497 = vunpack.c.l.b16 %v458
    %v498 = vunpack.c.l.b16 %v459
    %v499 = vunpack.c.l.b16 %v460
    %v500 = vunpack.c.l.b16 %v461
    %v501 = vunpack.c.l.b16 %v462
    %v502 = vunpack.c.l.b16 %v463
    %v503 = vunpack.c.l.b16 %v464
    %v504 = vunpack.c.l.b16 %v465
    %v505 = vunpack.c.l.b16 %v466
    %v506 = vunpack.c.l.b16 %v467
    %v507 = vunpack.c.l.b16 %v468
    %v508 = vpack.c.b16 %v493, %v492
    %v509 = vpack.c.b16 %v495, %v494
    %v510 = vpack.c.b16 %v497, %v496
    %v511 = vpack.c.b16 %v499, %v498
    %v512 = vpack.c.b16 %v501, %v500
    %v513 = vpack.c.b16 %v503, %v502
    %v514 = vpack.c.b16 %v505, %v504
    %v515 = vpack.c.b16 %v507, %v506
    %524 = vmatprep.subr.bf16.mxu0 0
    %525 = vmatpush1.bf16.msra.mxu0 %v515
    %526 = vmatprep.subr.bf16.mxu0 0
    %527 = vmatpush1.bf16.msra.mxu0 %v514
    %528 = vmatprep.subr.bf16.mxu0 0
    %529 = vmatpush1.bf16.msra.mxu0 %v513
    %530 = vmatprep.subr.bf16.mxu0 0
    %531 = vmatpush1.bf16.msra.mxu0 %v512
    %532 = vmatprep.subr.bf16.mxu0 0
    %533 = vmatpush1.bf16.msra.mxu0 %v511
    %534 = vmatprep.subr.bf16.mxu0 0
    %535 = vmatpush1.bf16.msra.mxu0 %v510
    %536 = vmatprep.subr.bf16.mxu0 0
    %537 = vmatpush1.bf16.msra.mxu0 %v509
    %538 = vmatprep.subr.bf16.mxu0 0
    %539 = vmatpush1.bf16.msra.mxu0 %v508
    %540 = vmatprep.subr.bf16.mxu0 0
    %541 = vmatpush2.bf16.msra.mxu0 0
    %542 = vmatprep.subr.bf16.mxu0 0
    %543 = vmatpush2.bf16.msra.mxu0 0
    %544 = vmatprep.subr.bf16.mxu0 0
    %545 = vmatpush2.bf16.msra.mxu0 0
    %546 = vmatprep.subr.bf16.mxu0 0
    %547 = vmatpush2.bf16.msra.mxu0 0
    %548 = vmatprep.subr.bf16.mxu0 0
    %549 = vmatpush2.bf16.msra.mxu0 0
    %550 = vmatprep.subr.bf16.mxu0 0
    %551 = vmatpush2.bf16.msra.mxu0 0
    %552 = vmatprep.subr.bf16.mxu0 0
    %553 = vmatpush2.bf16.msra.mxu0 0
    %554 = vmatprep.subr.bf16.mxu0 0
    %555 = vmatpush2.bf16.msra.mxu0 0
    %556 = vmatprep.mubr.bf16.mxu0 0
    %557 = vmatmul.mubr.bf16.gmra.mxu0 %v445
    %v558 = vpop.f32.mrf.mxu0
    %v559 = vadd.f32 %v474, %v558
    %v560 = vpop.f32.mrf.mxu0
    %v561 = vpop.f32.mrf.mxu0
    %v562 = vadd.f32 %v474, %v561
    %v563 = vpop.f32.mrf.mxu0
    %564 = vmatprep.mubr.bf16.mxu0 0
    %565 = vmatmul.mubr.bf16.gmra.mxu0 %v446
    %v566 = vpop.f32.mrf.mxu0
    %v567 = vadd.f32 %v474, %v566
    %v568 = vpop.f32.mrf.mxu0
    %v569 = vpop.f32.mrf.mxu0
    %v570 = vadd.f32 %v474, %v569
    %v571 = vpop.f32.mrf.mxu0
    %572 = vmatprep.mubr.bf16.mxu0 0
    %573 = vmatmul.mubr.bf16.gmra.mxu0 %v447
    %v574 = vpop.f32.mrf.mxu0
    %v575 = vadd.f32 %v474, %v574
    %v576 = vpop.f32.mrf.mxu0
    %v577 = vpop.f32.mrf.mxu0
    %v578 = vadd.f32 %v474, %v577
    %v579 = vpop.f32.mrf.mxu0
    %580 = vmatprep.mubr.bf16.mxu0 0
    %581 = vmatmul.mubr.bf16.gmra.mxu0 %v448
    %v582 = vpop.f32.mrf.mxu0
    %v583 = vadd.f32 %v474, %v582
    %v584 = vpop.f32.mrf.mxu0
    %v585 = vpop.f32.mrf.mxu0
    %v586 = vadd.f32 %v474, %v585
    %v587 = vpop.f32.mrf.mxu0
    %588 = vmatprep.mubr.bf16.mxu0 0
    %589 = vmatmul.mubr.bf16.gmra.mxu0 %v449
    %v590 = vpop.f32.mrf.mxu0
    %v591 = vadd.f32 %v474, %v590
    %v592 = vpop.f32.mrf.mxu0
    %v593 = vpop.f32.mrf.mxu0
    %v594 = vadd.f32 %v474, %v593
    %v595 = vpop.f32.mrf.mxu0
    %596 = vmatprep.mubr.bf16.mxu0 0
    %597 = vmatmul.mubr.bf16.gmra.mxu0 %v450
    %v598 = vpop.f32.mrf.mxu0
    %v599 = vadd.f32 %v474, %v598
    %v600 = vpop.f32.mrf.mxu0
    %v601 = vpop.f32.mrf.mxu0
    %v602 = vadd.f32 %v474, %v601
    %v603 = vpop.f32.mrf.mxu0
    %604 = vmatprep.mubr.bf16.mxu0 0
    %605 = vmatmul.mubr.bf16.gmra.mxu0 %v451
    %v606 = vpop.f32.mrf.mxu0
    %v607 = vadd.f32 %v474, %v606
    %v608 = vpop.f32.mrf.mxu0
    %v609 = vpop.f32.mrf.mxu0
    %v610 = vadd.f32 %v474, %v609
    %v611 = vpop.f32.mrf.mxu0
    %612 = vmatprep.mubr.bf16.mxu0 0
    %613 = vmatmul.mubr.bf16.gmra.mxu0 %v452
    %v614 = vpop.f32.mrf.mxu0
    %v615 = vadd.f32 %v474, %v614
    %v616 = vpop.f32.mrf.mxu0
    %v617 = vpop.f32.mrf.mxu0
    %v618 = vadd.f32 %v474, %v617
    %v619 = vpop.f32.mrf.mxu0
    %620 = vdwg.mxu0
    %v621 = vmax.f32 %v559, 0.0
    %v622 = vmax.f32 %v562, 0.0
    %v623 = vmax.f32 %v567, 0.0
    %v624 = vmax.f32 %v570, 0.0
    %v625 = vmax.f32 %v575, 0.0
    %v626 = vmax.f32 %v578, 0.0
    %v627 = vmax.f32 %v583, 0.0
    %v628 = vmax.f32 %v586, 0.0
    %v629 = vmax.f32 %v591, 0.0
    %v630 = vmax.f32 %v594, 0.0
    %v631 = vmax.f32 %v599, 0.0
    %v632 = vmax.f32 %v602, 0.0
    %v633 = vmax.f32 %v607, 0.0
    %v634 = vmax.f32 %v610, 0.0
    %v635 = vmax.f32 %v615, 0.0
    %v636 = vmax.f32 %v618, 0.0
    %v637 = vpack.c.bf16 %v622, %v621
    %v638 = vpack.c.bf16 %v624, %v623
    %v639 = vpack.c.bf16 %v626, %v625
    %v640 = vpack.c.bf16 %v628, %v627
    %v641 = vpack.c.bf16 %v630, %v629
    %v642 = vpack.c.bf16 %v632, %v631
    %v643 = vpack.c.bf16 %v634, %v633
    %v644 = vpack.c.bf16 %v636, %v635
    %v645 = vld [vmem:[%s7] sm:$0xf]
    %v646 = vld [vmem:[%s7 + $0x4] sm:$0xf]
    %v649 = vunpack.c.l.b16 %v645
    %v650 = vunpack.c.l.b16 %v646
    %v651 = vpack.c.b16 %v650, %v649
    %653 = vmatprep.subr.bf16.mxu0 0
    %654 = vmatpush1.bf16.xpose.msra.mxu0 %v644
    %655 = vmatprep.subr.bf16.mxu0 0
    %656 = vmatpush1.bf16.xpose.msra.mxu0 %v643
    %657 = vmatprep.subr.bf16.mxu0 0
    %658 = vmatpush1.bf16.xpose.msra.mxu0 %v642
    %659 = vmatprep.subr.bf16.mxu0 0
    %660 = vmatpush1.bf16.xpose.msra.mxu0 %v641
    %661 = vmatprep.subr.bf16.mxu0 0
    %662 = vmatpush1.bf16.xpose.msra.mxu0 %v640
    %663 = vmatprep.subr.bf16.mxu0 0
    %664 = vmatpush1.bf16.xpose.msra.mxu0 %v639
    %665 = vmatprep.subr.bf16.mxu0 0
    %666 = vmatpush1.bf16.xpose.msra.mxu0 %v638
    %667 = vmatprep.subr.bf16.mxu0 0
    %668 = vmatpush1.bf16.xpose.msra.mxu0 %v637
    %669 = vmatprep.subr.bf16.mxu0 0
    %670 = vmatpush2.bf16.xpose.msra.mxu0 0
    %671 = vmatprep.subr.bf16.mxu0 0
    %672 = vmatpush2.bf16.xpose.msra.mxu0 0
    %673 = vmatprep.subr.bf16.mxu0 0
    %674 = vmatpush2.bf16.xpose.msra.mxu0 0
    %675 = vmatprep.subr.bf16.mxu0 0
    %676 = vmatpush2.bf16.xpose.msra.mxu0 0
    %677 = vmatprep.subr.bf16.mxu0 0
    %678 = vmatpush2.bf16.xpose.msra.mxu0 0
    %679 = vmatprep.subr.bf16.mxu0 0
    %680 = vmatpush2.bf16.xpose.msra.mxu0 0
    %681 = vmatprep.subr.bf16.mxu0 0
    %682 = vmatpush2.bf16.xpose.msra.mxu0 0
    %683 = vmatprep.subr.bf16.mxu0 0
    %684 = vmatpush2.bf16.xpose.msra.mxu0 0
    %685 = vmatprep.mubr.bf16.mxu0 0
    %686 = vmatmul.mubr.bf16.gmra.mxu0 %v651
    %v687 = vpop.f32.mrf.mxu0
    %v688 = vadd.f32 0.0, %v687
    %v689 = vpop.f32.mrf.mxu0
    %v690 = vpop.f32.mrf.mxu0
    %v691 = vpop.f32.mrf.mxu0
    %692 = vdwg.mxu0
    %s693 = sld [smem:[#allocation2]]
    %v694 = vstv %s693
    %v695 = vadd.f32 %v688, %v694
    %696 = vst [vmem:[#allocation3] sm:$0xff] %v695
    // Predicated region
    $region38: #{tpu_custom_call.1} parent=1 // pred_check
      _
    $region39: #{tpu_custom_call.1} parent=1 // pred_check_branch
      %698 = sbr.rel (0) target = $region41
    $region40: #{tpu_custom_call.1} parent=1 // pred_region
      %s700 = ssub.s32 128, 128
      %701 = vsyncadd [#allocation4], %s700
      %s703 = sshll.u32 [#allocation3], 4
      %s704 = int_to_ptr.vmem [resolvable:$true] %s703
      %706 = dma.vmem_to_hbm [thread:$0]  %s704, 128, %s9, [#allocation4]
    $region41: #{tpu_custom_call.1} parent=1 // pred_fallthru
      _
    // Predicated region
    $region42: #{tpu_custom_call.1} parent=1 // pred_check
      _
    $region43: #{tpu_custom_call.1} parent=1 // pred_check_branch
      %708 = sbr.rel (0) target = $region45
    $region44: #{tpu_custom_call.1} parent=1 // pred_region
      %709 = dma.done [#allocation4], 128
    $region45: #{tpu_custom_call.1} parent=1 // pred_fallthru
      _
    %710 = vsyncpa [#allocation4], 1

</llo_original>
